<compile_context>
chip_gen: v6e
topology: v6e:2x2x1
jax: 0.10.0
libtpu: 0.0.40
codegen_flags: <defaults>
</compile_context>

<pallas_src>
import jax
import jax.numpy as jnp
from jax.experimental import pallas as pl
from jax.experimental.pallas import tpu as pltpu

FP8 = jnp.float8_e4m3fn
FP8_MAX = float(jnp.finfo(FP8).max)   # 448.0
FP8_MIN = float(jnp.finfo(FP8).min)   # -448.0


def _round_up(a: int, b: int) -> int:
    return ((a + b - 1) // b) * b


def _mxu_native_fp8() -> bool:
    """True only on TPU generations whose MXU ingests fp8 directly (v7x+)."""
    try:
        kind = jax.devices()[0].device_kind.lower()
    except Exception:
        return False
    return ("v7" in kind) or ("tpu7" in kind) or ("tpu 7" in kind)


# ----------------------- activation quantization (runs once) -----------------------
def _quantize_kernel(scale_ref, x_ref, q_ref):
    s = scale_ref[0]                                          # act_scale (SMEM scalar)
    xs = x_ref[...].astype(jnp.float32) / s                   # match module: x / act_scale
    q_ref[...] = jnp.clip(xs, FP8_MIN, FP8_MAX).astype(FP8)


def quantize_activation(x, act_scale, *, tm, tk):
    """Per-tensor static fp8 quantization, tiled over both M and K."""
    M, K = x.shape
    assert M % tm == 0 and K % tk == 0
    scale = jnp.asarray(act_scale, jnp.float32).reshape(1)
    # f32 in + fp8 out, double-buffered, plus headroom.
    vmem_limit = max(32 * 1024 * 1024,
                     int(1.5 * 2 * tm * tk * (x.dtype.itemsize + 1)) + (4 << 20))
    return pl.pallas_call(
        _quantize_kernel,
        out_shape=jax.ShapeDtypeStruct((M, K), FP8),
        grid=(M // tm, K // tk),
        in_specs=[
            pl.BlockSpec(memory_space=pltpu.MemorySpace.SMEM),   # act_scale
            pl.BlockSpec((tm, tk), lambda i, j: (i, j)),         # x tile
        ],
        out_specs=pl.BlockSpec((tm, tk), lambda i, j: (i, j)),
        compiler_params=pltpu.CompilerParams(
            dimension_semantics=("parallel", "parallel"),
            vmem_limit_bytes=min(vmem_limit, 96 * 1024 * 1024),
        ),
    )(scale, x)


# ------------------------------ tiled fp8 GEMM + bias ------------------------------
def _make_gemm_kernel(native_fp8: bool):
    def kernel(out_scale_ref,             # SMEM: act_scale * weight_scale
               q_ref, w_ref, b_ref,       # VMEM tiles: fp8 x, fp8 w^T, f32 bias
               o_ref,                     # VMEM output tile
               acc_ref):                  # f32 VMEM accumulator scratch
        k = pl.program_id(2)

        @pl.when(k == 0)
        def _():
            acc_ref[...] = jnp.zeros_like(acc_ref)

        if native_fp8:
            # v7x: MXU takes fp8_e4m3 operands directly (~2x bf16 rate, no VPU upcast).
            a, b = q_ref[...], w_ref[...]
        else:
            # v5e/v6e: fp8 values are exactly representable in bf16 -> lossless upcast.
            a = q_ref[...].astype(jnp.bfloat16)
            b = w_ref[...].astype(jnp.bfloat16)
        acc_ref[...] += jnp.dot(a, b, preferred_element_type=jnp.float32)

        @pl.when(k == pl.num_programs(2) - 1)
        def _():
            # Fold both per-tensor scales into one epilogue multiply, then add bias.
            o_ref[...] = (acc_ref[...] * out_scale_ref[0] + b_ref[...]).astype(o_ref.dtype)

    return kernel


def prepare_fp8_weight(qweight):
    """One-time [N, K] -> [K, N] re-layout of the frozen fp8 checkpoint weight.
    Call at load time; do NOT pay this per forward."""
    return jnp.transpose(qweight)


def fp8_static_linear(x, w_t, weight_scale, bias, act_scale,
                      *, tm=512, tn=512, tk=1024):
    """FP8StaticLinear forward.

    x        : [..., K] activations (any float dtype)
    w_t      : [K, N]   pre-transposed float8_e4m3fn weight (see prepare_fp8_weight)
    bias     : [N] or None
    scales   : per-tensor scalars
    Returns [..., N] in x.dtype.
    """
    orig_shape = x.shape
    K = orig_shape[-1]
    x2 = x.reshape(-1, K)
    M = x2.shape[0]
    K2, N = w_t.shape
    assert K == K2

    # ---- tile selection (fp8 operands pack (32,128); f32 accumulator wants (8,128)) ----
    tm_eff = min(tm, _round_up(M, 32))
    tn_eff = min(tn, _round_up(N, 128))
    tk_eff = min(tk, _round_up(K, 128))
    Mp, Np, Kp = _round_up(M, tm_eff), _round_up(N, tn_eff), _round_up(K, tk_eff)

    # ---- zero-pad to tile multiples (padded rows/cols contribute nothing) ----
    if (Mp, Kp) != (M, K):
        x2 = jnp.pad(x2, ((0, Mp - M), (0, Kp - K)))
    if (Kp, Np) != (K, N):
        w_t = jnp.pad(w_t, ((0, Kp - K), (0, Np - N)))

    if bias is None:
        bias = jnp.zeros((N,), jnp.float32)
    bias2d = jnp.asarray(bias, jnp.float32).reshape(1, N)
    if Np != N:
        bias2d = jnp.pad(bias2d, ((0, 0), (0, Np - N)))

    # ---- quantize the activation once (fp8), exactly like per_tensor_quantize ----
    q = quantize_activation(x2, act_scale, tm=tm_eff, tk=tk_eff)

    out_scale = (jnp.asarray(act_scale, jnp.float32)
                 * jnp.asarray(weight_scale, jnp.float32)).reshape(1)

    out_itemsize = jnp.dtype(x.dtype).itemsize
    grid = (Mp // tm_eff, Np // tn_eff, Kp // tk_eff)

    # Advisory cost; bytes account for per-tile operand re-reads under this tiling.
    cost = pl.CostEstimate(
        flops=2 * Mp * Np * Kp,
        transcendentals=0,
        bytes_accessed=(Mp * Kp) * grid[1]           # q (fp8), re-read per N tile
                       + (Kp * Np) * grid[0]         # w (fp8), re-read per M tile
                       + out_itemsize * Mp * Np + 4 * Np,
    )

    # Explicit VMEM budget: double-buffered fp8 operands + out + bias, f32 accumulator.
    vmem_bytes = (2 * (tm_eff * tk_eff + tk_eff * tn_eff + 4 * tn_eff
                       + tm_eff * tn_eff * out_itemsize)
                  + 4 * tm_eff * tn_eff)
    vmem_limit = max(32 * 1024 * 1024,
                     min(int(1.5 * vmem_bytes) + (8 << 20), 56 * 1024 * 1024))

    out = pl.pallas_call(
        _make_gemm_kernel(_mxu_native_fp8()),
        out_shape=jax.ShapeDtypeStruct((Mp, Np), x.dtype),
        grid=grid,
        in_specs=[
            pl.BlockSpec(memory_space=pltpu.MemorySpace.SMEM),        # folded scale
            pl.BlockSpec((tm_eff, tk_eff), lambda i, j, k: (i, k)),   # q   (fp8) [M,K]
            pl.BlockSpec((tk_eff, tn_eff), lambda i, j, k: (k, j)),   # w^T (fp8) [K,N]
            pl.BlockSpec((1, tn_eff),      lambda i, j, k: (0, j)),   # bias      [1,N]
        ],
        out_specs=pl.BlockSpec((tm_eff, tn_eff), lambda i, j, k: (i, j)),
        scratch_shapes=[pltpu.VMEM((tm_eff, tn_eff), jnp.float32)],
        compiler_params=pltpu.CompilerParams(
            dimension_semantics=("parallel", "parallel", "arbitrary"),
            vmem_limit_bytes=vmem_limit,
        ),
        cost_estimate=cost,
    )(out_scale, q, w_t, bias2d)

    if (Mp, Np) != (M, N):
        out = out[:M, :N]
    return out.reshape(*orig_shape[:-1], N)


# ------------------------------------ reference -------------------------------------
def _reference(x, qweight, weight_scale, bias, act_scale):
    q = jnp.clip(x.astype(jnp.float32) / act_scale, FP8_MIN, FP8_MAX).astype(FP8)
    a = q.astype(jnp.float32) * act_scale
    w = qweight.astype(jnp.float32) * weight_scale
    out = jnp.dot(a, w.T, precision=jax.lax.Precision.HIGHEST) + bias[None, :]
    return out.astype(x.dtype)


if __name__ == "__main__":
    # Small deterministic setup; lane/sublane friendly (fp8 tiles pack as (32,128)).
    M, K, N = 64, 256, 256
    key = jax.random.PRNGKey(0)
    kx, kw, kb = jax.random.split(key, 3)

    x = jax.random.normal(kx, (M, K), dtype=jnp.float32)
    w_fp = jax.random.normal(kw, (N, K), dtype=jnp.float32) * 0.05
    bias = jax.random.normal(kb, (N,), dtype=jnp.float32) * 0.1

    # Build the static per-tensor quantized weight exactly like a checkpoint would.
    weight_scale = jnp.max(jnp.abs(w_fp)) / FP8_MAX
    qweight = jnp.clip(w_fp / weight_scale, FP8_MIN, FP8_MAX).astype(FP8)
    act_scale = jnp.float32(0.05)

    # One-time, load-time re-layout of the frozen weight (hoisted out of the forward).
    w_t = jax.block_until_ready(prepare_fp8_weight(qweight))

    # Small tiles so the test exercises a non-trivial (2, 2, 2) grid with k-accumulation.
    out = fp8_static_linear(x, w_t, weight_scale, bias, act_scale,
                            tm=32, tn=128, tk=128)
    out = jax.block_until_ready(out)

    ref = _reference(x, qweight, weight_scale, bias, act_scale)
    assert out.shape == (M, N) and out.dtype == x.dtype
    err = float(jnp.max(jnp.abs(out - ref)))
    assert err < 2e-2, f"max err {err}"

    # Non-divisible M exercises the zero-padding path (40 rows padded to 64).
    x_small = x[:40]
    out2 = jax.block_until_ready(
        fp8_static_linear(x_small, w_t, weight_scale, bias, act_scale,
                          tm=32, tn=128, tk=128))
    ref2 = _reference(x_small, qweight, weight_scale, bias, act_scale)
    assert out2.shape == (40, N) and out2.dtype == x.dtype
    err2 = float(jnp.max(jnp.abs(out2 - ref2)))
    assert err2 < 2e-2, f"max err (padded) {err2}"

    print("KERNEL_OK")
</pallas_src>

<mosaic_0001>
module attributes {stable_mosaic.version = 11 : i64} {
  func.func @_quantize_kernel(%arg0: i32, %arg1: i32, %arg2: memref<1xf32, #tpu.memory_space<smem>>, %arg3: memref<32x128xf32, #tpu.memory_space<vmem>>, %arg4: memref<32x128xf8E4M3FN, #tpu.memory_space<vmem>>) attributes {dimension_semantics = [#tpu.dimension_semantics<parallel>, #tpu.dimension_semantics<parallel>], iteration_bounds = array<i64: 2, 2>, scalar_prefetch = 0 : i64, scratch_operands = 0 : i64, tpu.core_type = #tpu.core_type<tc>, window_params = [{transform_indices = @transform_0, window_bounds = array<i64: 1>}, {transform_indices = @transform_1, window_bounds = array<i64: 32, 128>}, {transform_indices = @transform_2, window_bounds = array<i64: 32, 128>}]} {
    %c0 = arith.constant 0 : index
    %0 = memref.load %arg2[%c0] : memref<1xf32, #tpu.memory_space<smem>>
    %c0_0 = arith.constant 0 : index
    %c0_1 = arith.constant 0 : index
    %1 = vector.load %arg3[%c0_0, %c0_1] : memref<32x128xf32, #tpu.memory_space<vmem>>, vector<32x128xf32>
    %2 = vector.broadcast %0 : f32 to vector<32x128xf32>
    %3 = arith.divf %1, %2 : vector<32x128xf32>
    %cst = arith.constant -4.480000e+02 : f32
    %cst_2 = arith.constant 4.480000e+02 : f32
    %4 = vector.broadcast %cst : f32 to vector<32x128xf32>
    %5 = arith.maximumf %4, %3 : vector<32x128xf32>
    %6 = vector.broadcast %cst_2 : f32 to vector<32x128xf32>
    %7 = arith.minimumf %6, %5 : vector<32x128xf32>
    %8 = arith.truncf %7 : vector<32x128xf32> to vector<32x128xf8E4M3FN>
    %c0_3 = arith.constant 0 : index
    %c0_4 = arith.constant 0 : index
    %9 = vector.load %arg4[%c0_3, %c0_4] : memref<32x128xf8E4M3FN, #tpu.memory_space<vmem>>, vector<32x128xf8E4M3FN>
    tpu.vector_store %arg4[%c0_3, %c0_4], %8 {strides = array<i32>} : memref<32x128xf8E4M3FN, #tpu.memory_space<vmem>>, vector<32x128xf8E4M3FN>,
    return
  }
  func.func @transform_0(%arg0: i32, %arg1: i32) -> i32 {
    %c0_i32 = arith.constant 0 : i32
    %c0_i32_0 = arith.constant 0 : i32
    return %c0_i32 : i32
  }
  func.func @transform_1(%arg0: i32, %arg1: i32) -> (i32, i32) {
    %c0_i32 = arith.constant 0 : i32
    return %arg0, %arg1 : i32, i32
  }
  func.func @transform_2(%arg0: i32, %arg1: i32) -> (i32, i32) {
    %c0_i32 = arith.constant 0 : i32
    return %arg0, %arg1 : i32, i32
  }
}

</mosaic_0001>

<llo_original>
// kernel: tpu_custom_call.1
$region0: #{tpu_custom_call.1}
  #allocation0 [shape = 'u32[]', space=smem, size = 0x4, offset = 0x4, fixed_abs, tag = 'smem constant byte address 0x4 - core index']
  #allocation1 [shape = 'u32[144,128]{1,0:T(1,128)}', space=vmem, size = 0x12000, scoped, tag = 'internal scratch']
  #allocation2 [shape = 'f32[1]{0:T(128)S(6)}', space=smem, size = 0x200, scoped, tag = 'scoped memory for tpu_custom_call.1']
  %s0 = inlined_call_operand.<no memory space> [shape: f32[1], index: 0, kind: input, shape index: {}]
  %s1 = inlined_call_operand.hbm [shape: f32[64,256], index: 1, kind: input, shape index: {}]
  %s2 = inlined_call_operand.hbm [shape: f8e4m3fn[64,256], index: 2, kind: output, shape index: {}]
  %s3 = sld [smem:[#allocation0]]
  $region45: #{tpu_custom_call.1} parent=0
    _
  %s5 = ssub.s32 1, %s3
  %s6 = scalar_select 0, %s5, %s3
  %7 = sst [smem:[#allocation2]] %s0
  $region1: #{tpu_custom_call.1} parent=0
    #allocation3 [shape = 'u8[32768]{0}', space=vmem, size = 0x8000, scoped, tag = 'input window, operand 1']
    #allocation4 [shape = 's32[2]{0}', space=sflag, size = 0x8, scoped, tag = 'scoped memory for tpu_custom_call.1']
    #allocation5 [shape = 's32[2]{0}', space=sflag, size = 0x8, scoped, tag = 'scoped memory for tpu_custom_call.1']
    #allocation6 [shape = 'u8[8192]{0}', space=vmem, size = 0x2000, scoped, tag = 'output window, operand 0']
    %8 = vsyncpa [#allocation4], 0
    %s9 = scalar_lea.sflag [#allocation4], 1
    %10 = vsyncpa %s9, 0
    %11 = vsyncpa [#allocation5], 0
    %s12 = scalar_lea.sflag [#allocation5], 1
    %13 = vsyncpa %s12, 0
    loop: start=0, step=1, limit=6
    $region2: #{tpu_custom_call.1} parent=1 // loop_pre_header
      _
    $region3: #{tpu_custom_call.1} parent=1 // loop_header
      %s15 = sphi 0, %s19
      %p16 = scmp.ge.s32.totalorder %s15, 6
      %s22 = sphi 0, %s34
      %s23 = sphi 0, %s30
      %s24 = sphi 0, %s22
      %s25 = sphi 0, %s23
      %s26 = sphi 0, %s24
      %s27 = sphi 0, %s25
      %s35 = sphi 0, %s35
      %s37 = sphi 0, %s35
      %s38 = sphi 0, %s37
      %s52 = sphi 0, %s38
      %s60 = sphi 0, %s62
      %s63 = sphi 0, %s60
      %s64 = sphi 0, %s63
      %s80 = sphi 0, %s64
      %s88 = sphi 0, %s90
      %s91 = sphi 0, %s88
      %s92 = sphi 0, %s91
      %s108 = sphi 0, %s92
    $region4: #{tpu_custom_call.1} parent=1 // loop_header_branch
      %18 = sbr.rel (%p16) target = $region8
    $region5: #{tpu_custom_call.1} parent=1 // loop_body
      %s20 = ssub.s32 %s15, 1
      %s21 = ssub.s32 %s15, 2
      %s28 = sadd.s32 1, %s23
      %p29 = scmp.ge.s32.totalorder %s28, 2
      %s30 = scalar_select %p29, 0, %s28
      %s31 = sadd.s32 1, %s22
      %s32 = scalar_select %p29, %s31, %s22
      %p33 = scmp.ge.s32.totalorder %s32, 2
      %s34 = scalar_select %p33, 0, %s32
      %s36 = sadd.s32 %s35, 1
      %p39 = scmp.eq.s32.totalorder %s15, 3
      %p40 = scmp.ne.s32.totalorder %s35, %s37
      %p41 = scmp.eq.s32.totalorder %s15, 0
      %p42 = por %p40, %p41
      %p43 = scmp.ne.s32.totalorder %s35, %s37
      %p44 = scmp.eq.s32.totalorder %s20, 3
      %p45 = por %p43, %p44
      %p46 = scmp.ne.s32.totalorder %s37, %s38
      %p47 = scmp.eq.s32.totalorder %s20, 0
      %p48 = por %p46, %p47
      %p49 = scmp.ne.s32.totalorder %s37, %s38
      %p50 = scmp.eq.s32.totalorder %s21, 3
      %p51 = por %p49, %p50
      %p53 = scmp.ne.s32.totalorder %s38, %s52
      %p54 = scmp.eq.s32.totalorder %s21, 0
      %p55 = por %p53, %p54
      %s56 = ssub.s32 %s22, %s34
      %s57 = ssub.s32 %s23, %s30
      %s58 = sor.u32 %s56, %s57
      %p59 = scmp.eq.s32.totalorder %s58, 0
      %s61 = sadd.s32 %s60, 1
      %s62 = scalar_select %p59, %s60, %s61
      %p65 = pneg %p59
      %p66 = scmp.eq.s32.totalorder %s15, 3
      %p67 = por %p65, %p66
      %p68 = scmp.ne.s32.totalorder %s60, %s63
      %p69 = scmp.eq.s32.totalorder %s15, 0
      %p70 = por %p68, %p69
      %p71 = scmp.ne.s32.totalorder %s60, %s63
      %p72 = scmp.eq.s32.totalorder %s20, 3
      %p73 = por %p71, %p72
      %p74 = scmp.ne.s32.totalorder %s63, %s64
      %p75 = scmp.eq.s32.totalorder %s20, 0
      %p76 = por %p74, %p75
      %p77 = scmp.ne.s32.totalorder %s63, %s64
      %p78 = scmp.eq.s32.totalorder %s21, 3
      %p79 = por %p77, %p78
      %p81 = scmp.ne.s32.totalorder %s64, %s80
      %p82 = scmp.eq.s32.totalorder %s21, 0
      %p83 = por %p81, %p82
      %s84 = ssub.s32 %s22, %s34
      %s85 = ssub.s32 %s23, %s30
      %s86 = sor.u32 %s84, %s85
      %p87 = scmp.eq.s32.totalorder %s86, 0
      %s89 = sadd.s32 %s88, 1
      %s90 = scalar_select %p87, %s88, %s89
      %p93 = pneg %p87
      %p94 = scmp.eq.s32.totalorder %s15, 3
      %p95 = por %p93, %p94
      %p96 = scmp.ne.s32.totalorder %s88, %s91
      %p97 = scmp.eq.s32.totalorder %s15, 0
      %p98 = por %p96, %p97
      %p99 = scmp.ne.s32.totalorder %s88, %s91
      %p100 = scmp.eq.s32.totalorder %s20, 3
      %p101 = por %p99, %p100
      %p102 = scmp.ne.s32.totalorder %s91, %s92
      %p103 = scmp.eq.s32.totalorder %s20, 0
      %p104 = por %p102, %p103
      %p105 = scmp.ne.s32.totalorder %s91, %s92
      %p106 = scmp.eq.s32.totalorder %s21, 3
      %p107 = por %p105, %p106
      %p109 = scmp.ne.s32.totalorder %s92, %s108
      %p110 = scmp.eq.s32.totalorder %s21, 0
      %p111 = por %p109, %p110
      %p112 = scmp.le.s32.totalorder 1, %s15
      %p113 = scmp.lt.s32.totalorder %s15, 5
      %p114 = pnand %p112, %p113
      %p115 = pneg %p114
      // Predicated region
      $region9: #{tpu_custom_call.1} parent=5 // pred_check
        _
      $region10: #{tpu_custom_call.1} parent=5 // pred_check_branch
        %117 = sbr.rel (%p114) target = $region12
      $region11: #{tpu_custom_call.1} parent=5 // pred_region
        %s118 = ssub.s32 %s15, 1
        // Predicated region
        $region13: #{tpu_custom_call.1} parent=11 // pred_check
          %p119 = pneg %p48
        $region14: #{tpu_custom_call.1} parent=11 // pred_check_branch
          %121 = sbr.rel (%p119) target = $region16
        $region15: #{tpu_custom_call.1} parent=11 // pred_region
          _
        $region16: #{tpu_custom_call.1} parent=11 // pred_fallthru
          _
      $region12: #{tpu_custom_call.1} parent=5 // pred_fallthru
        _
      %p122 = scmp.lt.s32.totalorder %s15, 4
      // Predicated region
      $region17: #{tpu_custom_call.1} parent=5 // pred_check
        %p123 = pneg %p122
      $region18: #{tpu_custom_call.1} parent=5 // pred_check_branch
        %125 = sbr.rel (%p123) target = $region20
      $region19: #{tpu_custom_call.1} parent=5 // pred_region
        // Predicated region
        $region21: #{tpu_custom_call.1} parent=19 // pred_check
          %p126 = pneg %p70
        $region22: #{tpu_custom_call.1} parent=19 // pred_check_branch
          %128 = sbr.rel (%p126) target = $region24
        $region23: #{tpu_custom_call.1} parent=19 // pred_region
          %s129 = sand.u32 %s60, 1
          %s130 = scalar_lea.sflag [#allocation4], %s129
          %s131 = sand.u32 %s60, 1
          %s132 = smul.addr %s131, 32
          %s133 = scalar_lea.vmem [#allocation3], %s132
          %s134 = smul.u32 4, %s22
          %s136 = ssub.s32 512, 512
          %137 = vsyncadd %s130, %s136
          %s138 = smul.addr %s134, 2
          %s139 = sadd.s32 %s23, %s138
          %s140 = smul.addr %s139, 128
          %s141 = scalar_lea.hbm %s1, %s140
          %s142 = sshll.u32 %s133, 4
          %s143 = int_to_ptr.vmem [resolvable:$true] %s142
          %148 = dma.hbm_to_vmem [thread:$0]  %s141, 512, %s143, %s130, 256, 128, 8
        $region24: #{tpu_custom_call.1} parent=19 // pred_fallthru
          _
      $region20: #{tpu_custom_call.1} parent=5 // pred_fallthru
        _
      %p149 = scmp.le.s32.totalorder 1, %s15
      %p150 = scmp.lt.s32.totalorder %s15, 5
      %p151 = pnand %p149, %p150
      %p152 = pneg %p151
      // Predicated region
      $region25: #{tpu_custom_call.1} parent=5 // pred_check
        _
      $region26: #{tpu_custom_call.1} parent=5 // pred_check_branch
        %154 = sbr.rel (%p151) target = $region28
      $region27: #{tpu_custom_call.1} parent=5 // pred_region
        %s155 = ssub.s32 %s15, 1
        %s156 = sand.u32 %s63, 1
        %s157 = scalar_lea.sflag [#allocation4], %s156
        %s158 = sand.u32 %s63, 1
        %s159 = smul.addr %s158, 32
        %s160 = scalar_lea.vmem [#allocation3], %s159
        // Predicated region
        $region29: #{tpu_custom_call.1} parent=27 // pred_check
          %p161 = pneg %p76
        $region30: #{tpu_custom_call.1} parent=27 // pred_check_branch
          %163 = sbr.rel (%p161) target = $region32
        $region31: #{tpu_custom_call.1} parent=27 // pred_region
          %164 = dma.done %s157, 512
        $region32: #{tpu_custom_call.1} parent=27 // pred_fallthru
          _
        %p165 = pneg %p48
        %p166 = pneg %p45
        %s167 = sand.u32 %s63, 1
        %s168 = scalar_lea.sflag [#allocation4], %s167
        %s169 = sand.u32 %s63, 1
        %s170 = smul.addr %s169, 32
        %s171 = scalar_lea.vmem [#allocation3], %s170
        %p172 = pneg %p76
        %p173 = pneg %p73
        %p174 = pneg %p104
        %p175 = pneg %p101
        %s176 = sand.u32 %s91, 1
        %s177 = scalar_lea.sflag [#allocation5], %s176
        %s178 = sand.u32 %s91, 1
        %s179 = smul.addr %s178, 8
        %s180 = scalar_lea.vmem [#allocation6], %s179
        %s181 = smul.u32 4, %s24
        %s182 = sld [smem:[#allocation2]]
        %v183 = vld [vmem:[%s160] sm:$0xff]
        %v184 = vld [vmem:[%s160 + $0x8] sm:$0xff]
        %v185 = vld [vmem:[%s160 + $0x10] sm:$0xff]
        %v186 = vld [vmem:[%s160 + $0x18] sm:$0xff]
        %v187 = vstv %s182
        %v188 = vrcp.pop %v187
        %v189 = vmul.f32 %v183, %v188
        %v190 = vmul.f32 %v184, %v188
        %v191 = vmul.f32 %v185, %v188
        %v192 = vmul.f32 %v186, %v188
        %v193 = vmax.f32 %v189, -448.0
        %v194 = vmax.f32 %v190, -448.0
        %v195 = vmax.f32 %v191, -448.0
        %v196 = vmax.f32 %v192, -448.0
        %v197 = vmin.f32 %v193, 448.0
        %v198 = vmin.f32 %v194, 448.0
        %v199 = vmin.f32 %v195, 448.0
        %v200 = vmin.f32 %v196, 448.0
        %v201 = vand.u32 2147483647, %v197
        %v202 = vand.u32 %v197, 2147483648
        %v204 = vadd.f32 1182793728, %v201
        %v206 = vsub.s32 %v204, 1182793728
        %v207 = vshrl.u32 %v197, 20
        %v208 = vand.u32 %v207, 1
        %v209 = vadd.s32 %v201, 3288858623
        %v210 = vadd.s32 %v209, %v208
        %v211 = vshrl.u32 %v210, 20
        %vm212 = vcmp.lt.s32.totalorder %v201, 1015021568
        %v213 = vsel %vm212, %v206, %v211
        %vm214 = vcmp.ge.s32.totalorder %v201, 1139277825
        %v215 = vsel %vm214, 127, %v213
        %vm216 = vcmp.ne.f32.partialorder %v197, %v197
        %v217 = vsel %vm216, 127, %v215
        %v218 = vshrl.u32 %v202, 24
        %v219 = vor.u32 %v217, %v218
        %v220 = vor.u32 %v219, 4294967040
        %v222 = vand.u32 2147483647, %v198
        %v223 = vand.u32 %v198, 2147483648
        %v225 = vadd.f32 1182793728, %v222
        %v227 = vsub.s32 %v225, 1182793728
        %v228 = vshrl.u32 %v198, 20
        %v229 = vand.u32 %v228, 1
        %v230 = vadd.s32 %v222, 3288858623
        %v231 = vadd.s32 %v230, %v229
        %v232 = vshrl.u32 %v231, 20
        %vm233 = vcmp.lt.s32.totalorder %v222, 1015021568
        %v234 = vsel %vm233, %v227, %v232
        %vm235 = vcmp.ge.s32.totalorder %v222, 1139277825
        %v236 = vsel %vm235, 127, %v234
        %vm237 = vcmp.ne.f32.partialorder %v198, %v198
        %v238 = vsel %vm237, 127, %v236
        %v239 = vshrl.u32 %v223, 24
        %v240 = vor.u32 %v238, %v239
        %v241 = vor.u32 %v240, 4294967040
        %v243 = vand.u32 2147483647, %v199
        %v244 = vand.u32 %v199, 2147483648
        %v246 = vadd.f32 1182793728, %v243
        %v248 = vsub.s32 %v246, 1182793728
        %v249 = vshrl.u32 %v199, 20
        %v250 = vand.u32 %v249, 1
        %v251 = vadd.s32 %v243, 3288858623
        %v252 = vadd.s32 %v251, %v250
        %v253 = vshrl.u32 %v252, 20
        %vm254 = vcmp.lt.s32.totalorder %v243, 1015021568
        %v255 = vsel %vm254, %v248, %v253
        %vm256 = vcmp.ge.s32.totalorder %v243, 1139277825
        %v257 = vsel %vm256, 127, %v255
        %vm258 = vcmp.ne.f32.partialorder %v199, %v199
        %v259 = vsel %vm258, 127, %v257
        %v260 = vshrl.u32 %v244, 24
        %v261 = vor.u32 %v259, %v260
        %v262 = vor.u32 %v261, 4294967040
        %v264 = vand.u32 2147483647, %v200
        %v265 = vand.u32 %v200, 2147483648
        %v267 = vadd.f32 1182793728, %v264
        %v269 = vsub.s32 %v267, 1182793728
        %v270 = vshrl.u32 %v200, 20
        %v271 = vand.u32 %v270, 1
        %v272 = vadd.s32 %v264, 3288858623
        %v273 = vadd.s32 %v272, %v271
        %v274 = vshrl.u32 %v273, 20
        %vm275 = vcmp.lt.s32.totalorder %v264, 1015021568
        %v276 = vsel %vm275, %v269, %v274
        %vm277 = vcmp.ge.s32.totalorder %v264, 1139277825
        %v278 = vsel %vm277, 127, %v276
        %vm279 = vcmp.ne.f32.partialorder %v200, %v200
        %v280 = vsel %vm279, 127, %v278
        %v281 = vshrl.u32 %v265, 24
        %v282 = vor.u32 %v280, %v281
        %v283 = vor.u32 %v282, 4294967040
        %v285 = vpack.c.b16 %v241, %v220
        %v286 = vpack.c.b16 %v283, %v262
        %v287 = vpack.c.b8 %v286, %v285
        %289 = vst [vmem:[%s180] sm:$0xff] %v287
        %s290 = sand.u32 %s91, 1
        %s291 = scalar_lea.sflag [#allocation5], %s290
        %s292 = sand.u32 %s91, 1
        %s293 = smul.addr %s292, 8
        %s294 = scalar_lea.vmem [#allocation6], %s293
        // Predicated region
        $region33: #{tpu_custom_call.1} parent=27 // pred_check
          %p295 = pneg %p101
        $region34: #{tpu_custom_call.1} parent=27 // pred_check_branch
          %297 = sbr.rel (%p295) target = $region36
        $region35: #{tpu_custom_call.1} parent=27 // pred_region
          %s299 = ssub.s32 128, 128
          %300 = vsyncadd %s291, %s299
          %s301 = smul.addr %s24, 2
          %s302 = sadd.s32 %s25, %s301
          %s303 = smul.addr %s302, 128
          %s304 = scalar_lea.hbm %s2, %s303
          %s306 = sshll.u32 %s294, 4
          %s307 = int_to_ptr.vmem [resolvable:$true] %s306
          %309 = dma.vmem_to_hbm [thread:$0]  %s307, 128, %s304, %s291
        $region36: #{tpu_custom_call.1} parent=27 // pred_fallthru
          _
      $region28: #{tpu_custom_call.1} parent=5 // pred_fallthru
        _
      %p310 = scmp.le.s32.totalorder 2, %s15
      // Predicated region
      $region37: #{tpu_custom_call.1} parent=5 // pred_check
        %p311 = pneg %p310
      $region38: #{tpu_custom_call.1} parent=5 // pred_check_branch
        %313 = sbr.rel (%p311) target = $region40
      $region39: #{tpu_custom_call.1} parent=5 // pred_region
        %s314 = ssub.s32 %s15, 2
        // Predicated region
        $region41: #{tpu_custom_call.1} parent=39 // pred_check
          %p315 = pneg %p107
        $region42: #{tpu_custom_call.1} parent=39 // pred_check_branch
          %317 = sbr.rel (%p315) target = $region44
        $region43: #{tpu_custom_call.1} parent=39 // pred_region
          %s318 = sand.u32 %s92, 1
          %s319 = scalar_lea.sflag [#allocation5], %s318
          %s320 = sand.u32 %s92, 1
          %s321 = smul.addr %s320, 8
          %s322 = scalar_lea.vmem [#allocation6], %s321
          %323 = dma.done %s319, 128
        $region44: #{tpu_custom_call.1} parent=39 // pred_fallthru
          _
      $region40: #{tpu_custom_call.1} parent=5 // pred_fallthru
        _
    $region6: #{tpu_custom_call.1} parent=1 // loop_footer
      %s19 = sadd.s32 1, %s15
    $region7: #{tpu_custom_call.1} parent=1 // loop_footer_branch
      %14 = sbr.rel target = $region3
    $region8: #{tpu_custom_call.1} parent=1 // loop_exit
      _
    %324 = vsyncpa [#allocation4], 1
    %s325 = scalar_lea.sflag [#allocation4], 1
    %326 = vsyncpa %s325, 1
    %327 = vsyncpa [#allocation5], 1
    %s328 = scalar_lea.sflag [#allocation5], 1
    %329 = vsyncpa %s328, 1

</llo_original>
